<compile_context>
chip_gen: v5e
topology: v5e:2x2
jax: 0.10.0
libtpu: 0.0.40
codegen_flags: <defaults>
</compile_context>

<pallas_src>
import functools

import jax
import jax.numpy as jnp
from jax import lax
from jax.experimental import pallas as pl
from jax.experimental.pallas import tpu as pltpu

_SUB = 128  # lanes (batch columns) per in-kernel sub-tile


def _round_up(n: int, m: int) -> int:
    return ((n + m - 1) // m) * m


def _latent_ode_kernel(x_ref, w1t_ref, b1_ref, w2t_ref, b2_ref, w3t_ref,
                       b3_ref, out_ref):
    """One batch block (inner sub-tiles of 128 lanes); weights VMEM-resident.

    x_ref   : (inner, Lp, 128) f32   transposed/padded batch block
    w1t_ref : (Hp, Lp) f32           b1_ref : (Hp, 1) f32
    w2t_ref : (Hp, Hp) f32 or bf16   b2_ref : (Hp, 1) f32
    w3t_ref : (Lp, Hp) f32           b3_ref : (Lp, 1) f32
    out_ref : (inner, Lp, 128) f32
    """
    inner = x_ref.shape[0]
    mxu_dtype = w2t_ref.dtype

    def body(s, carry):
        xs = x_ref[s]                                   # (Lp, 128), lane-dense
        # Layer 1 (K = Lp = 8): MXU.
        h1 = jnp.dot(w1t_ref[...], xs, preferred_element_type=jnp.float32)
        h1 = jnp.tanh(h1 + b1_ref[...])                 # (Hp, 128) f32
        # Layer 2 (Hp x Hp): MXU; operands optionally bf16, f32 accumulation.
        h2 = jnp.dot(w2t_ref[...], h1.astype(mxu_dtype),
                     preferred_element_type=jnp.float32)
        h2 = jnp.tanh(h2 + b2_ref[...])                 # (Hp, 128) f32
        # Layer 3 (M = Lp = 8): MXU (was VALU/XLU reductions before).
        o = jnp.dot(w3t_ref[...], h2, preferred_element_type=jnp.float32)
        out_ref[s] = (o + b3_ref[...]).astype(out_ref.dtype)
        return carry

    # fori_loop (not a Python for) bounds the live ranges of h1/h2 to one
    # sub-tile, avoiding f32 spills.
    lax.fori_loop(0, inner, body, 0)


def prep_params(params, mxu_dtype=jnp.float32):
    """One-time weight prep: transpose to the (out, in) kernel layout and pad.

    Hidden dim padded to a multiple of 128 (lane-dense), latent dim to a
    multiple of 8 (sublane-aligned).  Zero padding is mathematically exact:
    padded hidden units are tanh(0)=0 and multiply zero-padded W3 columns.
    On v6e/v7x pass mxu_dtype=jnp.bfloat16 to feed the layer-2 MXU bf16
    operands (f32 accumulation is kept).
    """
    l, h = params["w1"].shape
    hp = _round_up(h, 128)
    lp = _round_up(l, 8)
    ph, pl_ = hp - h, lp - l
    w1t = jnp.pad(params["w1"].T, ((0, ph), (0, pl_)))                 # (Hp, Lp)
    b1 = jnp.pad(params["b1"], (0, ph)).reshape(hp, 1)
    w2t = jnp.pad(params["w2"].T, ((0, ph), (0, ph))).astype(mxu_dtype)  # (Hp, Hp)
    b2 = jnp.pad(params["b2"], (0, ph)).reshape(hp, 1)
    w3t = jnp.pad(params["w3"].T, ((0, pl_), (0, ph)))                 # (Lp, Hp)
    b3 = jnp.pad(params["b3"], (0, pl_)).reshape(lp, 1)
    return {"w1t": w1t, "b1": b1, "w2t": w2t, "b2": b2, "w3t": w3t, "b3": b3}


@functools.partial(jax.jit, static_argnames=("block_batch",))
def latent_ode_forward(t, x, prepped, *, block_batch=512):
    """Pallas-backed LatentODE.forward(t, x).

    t        : unused time tensor (signature parity with the nn.Module)
    x        : (nbatch, latent_dim) f32.  For a full ODE solve, flatten the
               many evaluation points (time steps x RK stages x batch) into
               this axis so one pallas_call covers them all.
    prepped  : output of prep_params (weights already padded/transposed).
    block_batch : batch columns per grid step (multiple of 128; default 512 =>
               4 sub-tiles per step through the in-kernel loop).
    """
    del t  # unused, as in the reference module
    nbatch, latent_dim = x.shape
    lp = prepped["w3t"].shape[0]
    hp = prepped["w2t"].shape[0]

    # Batch tiling: 128-lane sub-tiles, `inner` of them per grid step.
    b128 = _round_up(max(nbatch, 1), _SUB)
    inner = max(1, min(block_batch // _SUB, b128 // _SUB))
    bp = _round_up(b128, _SUB * inner)
    n_sub = bp // _SUB

    # Per-call x prep only: pad batch rows / latent cols, transpose so batch
    # sits on lanes -> (n_sub, Lp, 128) slabs.
    xt = jnp.pad(x, ((0, bp - nbatch), (0, lp - latent_dim)))
    x3 = jnp.transpose(xt.reshape(n_sub, _SUB, lp), (0, 2, 1))

    out3 = pl.pallas_call(
        _latent_ode_kernel,
        out_shape=jax.ShapeDtypeStruct((n_sub, lp, _SUB), x.dtype),
        grid=(n_sub // inner,),
        in_specs=[
            pl.BlockSpec((inner, lp, _SUB), lambda i: (i, 0, 0)),  # x block
            pl.BlockSpec((hp, lp), lambda i: (0, 0)),              # W1^T (resident)
            pl.BlockSpec((hp, 1), lambda i: (0, 0)),               # b1   (resident)
            pl.BlockSpec((hp, hp), lambda i: (0, 0)),              # W2^T (resident)
            pl.BlockSpec((hp, 1), lambda i: (0, 0)),               # b2   (resident)
            pl.BlockSpec((lp, hp), lambda i: (0, 0)),              # W3^T (resident)
            pl.BlockSpec((lp, 1), lambda i: (0, 0)),               # b3   (resident)
        ],
        out_specs=pl.BlockSpec((inner, lp, _SUB), lambda i: (i, 0, 0)),
        compiler_params=pltpu.CompilerParams(
            dimension_semantics=("parallel",)),
    )(x3, prepped["w1t"], prepped["b1"], prepped["w2t"], prepped["b2"],
      prepped["w3t"], prepped["b3"])

    # Back to the PyTorch (nbatch, latent_dim) layout.
    out = jnp.transpose(out3, (0, 2, 1)).reshape(bp, lp)
    return out[:nbatch, :latent_dim]


def init_params(key, latent_dim, nhidden):
    """nn.Linear-style U(-1/sqrt(fan_in), 1/sqrt(fan_in)) init.

    Weights stored as (in_features, out_features), i.e. y = x @ W + b.
    """
    k = jax.random.split(key, 6)

    def linear(kw, kb, fan_in, fan_out):
        bound = 1.0 / jnp.sqrt(float(fan_in))
        w = jax.random.uniform(kw, (fan_in, fan_out), jnp.float32, -bound, bound)
        b = jax.random.uniform(kb, (fan_out,), jnp.float32, -bound, bound)
        return w, b

    w1, b1 = linear(k[0], k[1], latent_dim, nhidden)
    w2, b2 = linear(k[2], k[3], nhidden, nhidden)
    w3, b3 = linear(k[4], k[5], nhidden, latent_dim)
    return {"w1": w1, "b1": b1, "w2": w2, "b2": b2, "w3": w3, "b3": b3}


def _reference_forward(t, x, p):
    """Pure-JAX reference for correctness checking."""
    del t
    h = jnp.tanh(x @ p["w1"] + p["b1"])
    h = jnp.tanh(h @ p["w2"] + p["b2"])
    return h @ p["w3"] + p["b3"]


if __name__ == "__main__":
    latent_dim = 4
    nhidden = 32

    key = jax.random.PRNGKey(0)
    kx1, kx2, kt, kp = jax.random.split(key, 4)

    params = init_params(kp, latent_dim, nhidden)
    t = jax.random.uniform(kt, (1,), dtype=jnp.float32)  # unused (parity)

    prepped_f32 = prep_params(params, mxu_dtype=jnp.float32)

    # Small batch: single grid step, inner=1 (exact f32 path).
    x_small = jax.random.normal(kx1, (16, latent_dim), dtype=jnp.float32)
    out_small = jax.block_until_ready(latent_ode_forward(t, x_small, prepped_f32))
    ref_small = _reference_forward(t, x_small, params)
    assert out_small.shape == (16, latent_dim)
    assert jnp.allclose(out_small, ref_small, atol=1e-5, rtol=1e-5), "f32 small mismatch"

    # Larger "flattened ODE evaluation points" batch: grid of 2 blocks
    # (megacore sharding on v7x) with 2 sub-tiles per block (in-kernel loop).
    x_big = jax.random.normal(kx2, (300, latent_dim), dtype=jnp.float32)
    out_big = jax.block_until_ready(
        latent_ode_forward(t, x_big, prepped_f32, block_batch=256))
    ref_big = _reference_forward(t, x_big, params)
    assert out_big.shape == (300, latent_dim)
    assert jnp.allclose(out_big, ref_big, atol=1e-5, rtol=1e-5), "f32 big mismatch"

    # bf16 MXU-operand path for the layer-2 dot (the v6e/v7x recommendation);
    # f32 accumulation kept, tolerance relaxed accordingly.
    prepped_bf16 = prep_params(params, mxu_dtype=jnp.bfloat16)
    out_bf16 = jax.block_until_ready(
        latent_ode_forward(t, x_big, prepped_bf16, block_batch=256))
    assert jnp.allclose(out_bf16, ref_big, atol=3e-2, rtol=3e-2), "bf16 mismatch"

    print("KERNEL_OK")
</pallas_src>

<mosaic_0001>
module attributes {stable_mosaic.version = 11 : i64} {
  func.func @_latent_ode_kernel(%arg0: i32, %arg1: memref<1x8x128xf32, #tpu.memory_space<vmem>>, %arg2: memref<128x8xf32, #tpu.memory_space<vmem>>, %arg3: memref<128x1xf32, #tpu.memory_space<vmem>>, %arg4: memref<128x128xf32, #tpu.memory_space<vmem>>, %arg5: memref<128x1xf32, #tpu.memory_space<vmem>>, %arg6: memref<8x128xf32, #tpu.memory_space<vmem>>, %arg7: memref<8x1xf32, #tpu.memory_space<vmem>>, %arg8: memref<1x8x128xf32, #tpu.memory_space<vmem>>) attributes {dimension_semantics = [#tpu.dimension_semantics<parallel>], iteration_bounds = array<i64: 1>, scalar_prefetch = 0 : i64, scratch_operands = 0 : i64, tpu.core_type = #tpu.core_type<tc>, window_params = [{transform_indices = @transform_0, window_bounds = array<i64: 1, 8, 128>}, {pipeline_mode = #tpu.pipeline_mode<synchronous>, transform_indices = @transform_1, window_bounds = array<i64: 128, 8>}, {pipeline_mode = #tpu.pipeline_mode<synchronous>, transform_indices = @transform_2, window_bounds = array<i64: 128, 1>}, {pipeline_mode = #tpu.pipeline_mode<synchronous>, transform_indices = @transform_3, window_bounds = array<i64: 128, 128>}, {pipeline_mode = #tpu.pipeline_mode<synchronous>, transform_indices = @transform_4, window_bounds = array<i64: 128, 1>}, {pipeline_mode = #tpu.pipeline_mode<synchronous>, transform_indices = @transform_5, window_bounds = array<i64: 8, 128>}, {pipeline_mode = #tpu.pipeline_mode<synchronous>, transform_indices = @transform_6, window_bounds = array<i64: 8, 1>}, {transform_indices = @transform_7, window_bounds = array<i64: 1, 8, 128>}]} {
    %c0_i32 = arith.constant 0 : i32
    %0 = arith.index_cast %c0_i32 : i32 to index
    %c0 = arith.constant 0 : index
    %c0_0 = arith.constant 0 : index
    %1 = vector.load %arg1[%0, %c0, %c0_0] : memref<1x8x128xf32, #tpu.memory_space<vmem>>, vector<1x8x128xf32>
    %2 = vector.shape_cast %1 : vector<1x8x128xf32> to vector<8x128xf32>
    %c0_1 = arith.constant 0 : index
    %c0_2 = arith.constant 0 : index
    %3 = vector.load %arg2[%c0_1, %c0_2] : memref<128x8xf32, #tpu.memory_space<vmem>>, vector<128x8xf32>
    %cst = arith.constant dense<0.000000e+00> : vector<128x128xf32>
    %4 = tpu.matmul %3, %2, %cst {dimension_numbers = #tpu.dot_dimension_numbers<[1], [0], [0], [1], [0, 0, 1, 1], [], []>} : vector<128x8xf32>, vector<8x128xf32>, vector<128x128xf32> -> vector<128x128xf32>
    %c0_3 = arith.constant 0 : index
    %c0_4 = arith.constant 0 : index
    %5 = vector.load %arg3[%c0_3, %c0_4] : memref<128x1xf32, #tpu.memory_space<vmem>>, vector<128x1xf32>
    %6 = vector.broadcast %5 : vector<128x1xf32> to vector<128x128xf32>
    %7 = arith.addf %4, %6 : vector<128x128xf32>
    %8 = math.tanh %7 : vector<128x128xf32>
    %c0_5 = arith.constant 0 : index
    %c0_6 = arith.constant 0 : index
    %9 = vector.load %arg4[%c0_5, %c0_6] : memref<128x128xf32, #tpu.memory_space<vmem>>, vector<128x128xf32>
    %cst_7 = arith.constant dense<0.000000e+00> : vector<128x128xf32>
    %10 = tpu.matmul %9, %8, %cst_7 {dimension_numbers = #tpu.dot_dimension_numbers<[1], [0], [0], [1], [0, 0, 1, 1], [], []>} : vector<128x128xf32>, vector<128x128xf32>, vector<128x128xf32> -> vector<128x128xf32>
    %c0_8 = arith.constant 0 : index
    %c0_9 = arith.constant 0 : index
    %11 = vector.load %arg5[%c0_8, %c0_9] : memref<128x1xf32, #tpu.memory_space<vmem>>, vector<128x1xf32>
    %12 = vector.broadcast %11 : vector<128x1xf32> to vector<128x128xf32>
    %13 = arith.addf %10, %12 : vector<128x128xf32>
    %14 = math.tanh %13 : vector<128x128xf32>
    %c0_10 = arith.constant 0 : index
    %c0_11 = arith.constant 0 : index
    %15 = vector.load %arg6[%c0_10, %c0_11] : memref<8x128xf32, #tpu.memory_space<vmem>>, vector<8x128xf32>
    %cst_12 = arith.constant dense<0.000000e+00> : vector<8x128xf32>
    %16 = tpu.matmul %15, %14, %cst_12 {dimension_numbers = #tpu.dot_dimension_numbers<[1], [0], [0], [1], [0, 0, 1, 1], [], []>} : vector<8x128xf32>, vector<128x128xf32>, vector<8x128xf32> -> vector<8x128xf32>
    %c0_13 = arith.constant 0 : index
    %c0_14 = arith.constant 0 : index
    %17 = vector.load %arg7[%c0_13, %c0_14] : memref<8x1xf32, #tpu.memory_space<vmem>>, vector<8x1xf32>
    %18 = vector.broadcast %17 : vector<8x1xf32> to vector<8x128xf32>
    %19 = arith.addf %16, %18 : vector<8x128xf32>
    %20 = arith.index_cast %c0_i32 : i32 to index
    %c0_15 = arith.constant 0 : index
    %c0_16 = arith.constant 0 : index
    %21 = vector.load %arg8[%20, %c0_15, %c0_16] : memref<1x8x128xf32, #tpu.memory_space<vmem>>, vector<1x8x128xf32>
    %22 = vector.shape_cast %21 : vector<1x8x128xf32> to vector<8x128xf32>
    %23 = vector.shape_cast %19 : vector<8x128xf32> to vector<1x8x128xf32>
    tpu.vector_store %arg8[%20, %c0_15, %c0_16], %23 {strides = array<i32>} : memref<1x8x128xf32, #tpu.memory_space<vmem>>, vector<1x8x128xf32>,
    %c1_i32 = arith.constant 1 : i32
    return
  }
  func.func @transform_0(%arg0: i32) -> (i32, i32, i32) {
    %c0_i32 = arith.constant 0 : i32
    %c0_i32_0 = arith.constant 0 : i32
    %c0_i32_1 = arith.constant 0 : i32
    return %arg0, %c0_i32, %c0_i32_0 : i32, i32, i32
  }
  func.func @transform_1(%arg0: i32) -> (i32, i32) {
    %c0_i32 = arith.constant 0 : i32
    %c0_i32_0 = arith.constant 0 : i32
    %c0_i32_1 = arith.constant 0 : i32
    return %c0_i32, %c0_i32_0 : i32, i32
  }
  func.func @transform_2(%arg0: i32) -> (i32, i32) {
    %c0_i32 = arith.constant 0 : i32
    %c0_i32_0 = arith.constant 0 : i32
    %c0_i32_1 = arith.constant 0 : i32
    return %c0_i32, %c0_i32_0 : i32, i32
  }
  func.func @transform_3(%arg0: i32) -> (i32, i32) {
    %c0_i32 = arith.constant 0 : i32
    %c0_i32_0 = arith.constant 0 : i32
    %c0_i32_1 = arith.constant 0 : i32
    return %c0_i32, %c0_i32_0 : i32, i32
  }
  func.func @transform_4(%arg0: i32) -> (i32, i32) {
    %c0_i32 = arith.constant 0 : i32
    %c0_i32_0 = arith.constant 0 : i32
    %c0_i32_1 = arith.constant 0 : i32
    return %c0_i32, %c0_i32_0 : i32, i32
  }
  func.func @transform_5(%arg0: i32) -> (i32, i32) {
    %c0_i32 = arith.constant 0 : i32
    %c0_i32_0 = arith.constant 0 : i32
    %c0_i32_1 = arith.constant 0 : i32
    return %c0_i32, %c0_i32_0 : i32, i32
  }
  func.func @transform_6(%arg0: i32) -> (i32, i32) {
    %c0_i32 = arith.constant 0 : i32
    %c0_i32_0 = arith.constant 0 : i32
    %c0_i32_1 = arith.constant 0 : i32
    return %c0_i32, %c0_i32_0 : i32, i32
  }
  func.func @transform_7(%arg0: i32) -> (i32, i32, i32) {
    %c0_i32 = arith.constant 0 : i32
    %c0_i32_0 = arith.constant 0 : i32
    %c0_i32_1 = arith.constant 0 : i32
    return %arg0, %c0_i32, %c0_i32_0 : i32, i32, i32
  }
}

</mosaic_0001>

<llo_original>
// kernel: latent_ode_forward.1
$region0: #{latent_ode_forward.1}
  #allocation0 [shape = 'u32[]', space=smem, size = 0x4, offset = 0x4, fixed_abs, tag = 'smem constant byte address 0x4 - core index']
  #allocation1 [shape = 'u32[72,128]{1,0:T(1,128)}', space=vmem, size = 0x9000, scoped, tag = 'internal scratch']
  %s0 = inlined_call_operand.vmem [shape: f32[1,8,128], index: 0, kind: input, shape index: {}]
  %s1 = inlined_call_operand.vmem [shape: f32[128,8], index: 1, kind: input, shape index: {}]
  %s2 = inlined_call_operand.vmem [shape: f32[128,1], index: 2, kind: input, shape index: {}]
  %s3 = inlined_call_operand.vmem [shape: f32[128,128], index: 3, kind: input, shape index: {}]
  %s4 = inlined_call_operand.vmem [shape: f32[128,1], index: 4, kind: input, shape index: {}]
  %s5 = inlined_call_operand.vmem [shape: f32[8,128], index: 5, kind: input, shape index: {}]
  %s6 = inlined_call_operand.vmem [shape: f32[8,1], index: 6, kind: input, shape index: {}]
  %s7 = inlined_call_operand.vmem [shape: f32[1,8,128], index: 7, kind: output, shape index: {}]
  %s8 = sld [smem:[#allocation0]]
  $region38: #{latent_ode_forward.1} parent=0
    _
  %s10 = ssub.s32 1, %s8
  %s11 = scalar_select 0, %s10, %s8
  // Predicated region
  $region2: #{latent_ode_forward.1} parent=0 // pred_check
    _
  $region3: #{latent_ode_forward.1} parent=0 // pred_check_branch
    %13 = sbr.rel (0) target = $region5
  $region4: #{latent_ode_forward.1} parent=0 // pred_region
    _
  $region5: #{latent_ode_forward.1} parent=0 // pred_fallthru
    _
  // Predicated region
  $region6: #{latent_ode_forward.1} parent=0 // pred_check
    _
  $region7: #{latent_ode_forward.1} parent=0 // pred_check_branch
    %15 = sbr.rel (0) target = $region9
  $region8: #{latent_ode_forward.1} parent=0 // pred_region
    _
  $region9: #{latent_ode_forward.1} parent=0 // pred_fallthru
    _
  // Predicated region
  $region10: #{latent_ode_forward.1} parent=0 // pred_check
    _
  $region11: #{latent_ode_forward.1} parent=0 // pred_check_branch
    %17 = sbr.rel (0) target = $region13
  $region12: #{latent_ode_forward.1} parent=0 // pred_region
    _
  $region13: #{latent_ode_forward.1} parent=0 // pred_fallthru
    _
  // Predicated region
  $region14: #{latent_ode_forward.1} parent=0 // pred_check
    _
  $region15: #{latent_ode_forward.1} parent=0 // pred_check_branch
    %19 = sbr.rel (0) target = $region17
  $region16: #{latent_ode_forward.1} parent=0 // pred_region
    _
  $region17: #{latent_ode_forward.1} parent=0 // pred_fallthru
    _
  // Predicated region
  $region18: #{latent_ode_forward.1} parent=0 // pred_check
    _
  $region19: #{latent_ode_forward.1} parent=0 // pred_check_branch
    %21 = sbr.rel (0) target = $region21
  $region20: #{latent_ode_forward.1} parent=0 // pred_region
    _
  $region21: #{latent_ode_forward.1} parent=0 // pred_fallthru
    _
  // Predicated region
  $region22: #{latent_ode_forward.1} parent=0 // pred_check
    _
  $region23: #{latent_ode_forward.1} parent=0 // pred_check_branch
    %23 = sbr.rel (0) target = $region25
  $region24: #{latent_ode_forward.1} parent=0 // pred_region
    _
  $region25: #{latent_ode_forward.1} parent=0 // pred_fallthru
    _
  // Predicated region
  $region26: #{latent_ode_forward.1} parent=0 // pred_check
    _
  $region27: #{latent_ode_forward.1} parent=0 // pred_check_branch
    %25 = sbr.rel (0) target = $region29
  $region28: #{latent_ode_forward.1} parent=0 // pred_region
    _
  $region29: #{latent_ode_forward.1} parent=0 // pred_fallthru
    _
  %v26 = vld [vmem:[%s0] sm:$0xff]
  %v27 = vld [vmem:[%s1] sm:$0xff]
  %v28 = vld [vmem:[%s1 + $0x8] sm:$0xff]
  %v29 = vld [vmem:[%s1 + $0x10] sm:$0xff]
  %v30 = vld [vmem:[%s1 + $0x18] sm:$0xff]
  %v31 = vld [vmem:[%s1 + $0x20] sm:$0xff]
  %v32 = vld [vmem:[%s1 + $0x28] sm:$0xff]
  %v33 = vld [vmem:[%s1 + $0x30] sm:$0xff]
  %v34 = vld [vmem:[%s1 + $0x38] sm:$0xff]
  %v35 = vld [vmem:[%s1 + $0x40] sm:$0xff]
  %v36 = vld [vmem:[%s1 + $0x48] sm:$0xff]
  %v37 = vld [vmem:[%s1 + $0x50] sm:$0xff]
  %v38 = vld [vmem:[%s1 + $0x58] sm:$0xff]
  %v39 = vld [vmem:[%s1 + $0x60] sm:$0xff]
  %v40 = vld [vmem:[%s1 + $0x68] sm:$0xff]
  %v41 = vld [vmem:[%s1 + $0x70] sm:$0xff]
  %v42 = vld [vmem:[%s1 + $0x78] sm:$0xff]
  %v43 = vld [vmem:[%s2] sm:$0xff]
  %v44 = vld [vmem:[%s2 + $0x8] sm:$0xff]
  %v45 = vld [vmem:[%s2 + $0x10] sm:$0xff]
  %v46 = vld [vmem:[%s2 + $0x18] sm:$0xff]
  %v47 = vld [vmem:[%s2 + $0x20] sm:$0xff]
  %v48 = vld [vmem:[%s2 + $0x28] sm:$0xff]
  %v49 = vld [vmem:[%s2 + $0x30] sm:$0xff]
  %v50 = vld [vmem:[%s2 + $0x38] sm:$0xff]
  %v51 = vld [vmem:[%s2 + $0x40] sm:$0xff]
  %v52 = vld [vmem:[%s2 + $0x48] sm:$0xff]
  %v53 = vld [vmem:[%s2 + $0x50] sm:$0xff]
  %v54 = vld [vmem:[%s2 + $0x58] sm:$0xff]
  %v55 = vld [vmem:[%s2 + $0x60] sm:$0xff]
  %v56 = vld [vmem:[%s2 + $0x68] sm:$0xff]
  %v57 = vld [vmem:[%s2 + $0x70] sm:$0xff]
  %v58 = vld [vmem:[%s2 + $0x78] sm:$0xff]
  %60 = vset.pattern.permute.xlu0 0
  %61 = vperm.xlu0 %60, %v43
  %v62 = vpop.permute.xlu0 %61
  %65 = vset.pattern.permute.xlu0 0
  %66 = vperm.xlu0 %65, %v44
  %v67 = vpop.permute.xlu0 %66
  %70 = vset.pattern.permute.xlu0 0
  %71 = vperm.xlu0 %70, %v45
  %v72 = vpop.permute.xlu0 %71
  %75 = vset.pattern.permute.xlu0 0
  %76 = vperm.xlu0 %75, %v46
  %v77 = vpop.permute.xlu0 %76
  %80 = vset.pattern.permute.xlu0 0
  %81 = vperm.xlu0 %80, %v47
  %v82 = vpop.permute.xlu0 %81
  %85 = vset.pattern.permute.xlu0 0
  %86 = vperm.xlu0 %85, %v48
  %v87 = vpop.permute.xlu0 %86
  %90 = vset.pattern.permute.xlu0 0
  %91 = vperm.xlu0 %90, %v49
  %v92 = vpop.permute.xlu0 %91
  %95 = vset.pattern.permute.xlu0 0
  %96 = vperm.xlu0 %95, %v50
  %v97 = vpop.permute.xlu0 %96
  %100 = vset.pattern.permute.xlu0 0
  %101 = vperm.xlu0 %100, %v51
  %v102 = vpop.permute.xlu0 %101
  %105 = vset.pattern.permute.xlu0 0
  %106 = vperm.xlu0 %105, %v52
  %v107 = vpop.permute.xlu0 %106
  %110 = vset.pattern.permute.xlu0 0
  %111 = vperm.xlu0 %110, %v53
  %v112 = vpop.permute.xlu0 %111
  %115 = vset.pattern.permute.xlu0 0
  %116 = vperm.xlu0 %115, %v54
  %v117 = vpop.permute.xlu0 %116
  %120 = vset.pattern.permute.xlu0 0
  %121 = vperm.xlu0 %120, %v55
  %v122 = vpop.permute.xlu0 %121
  %125 = vset.pattern.permute.xlu0 0
  %126 = vperm.xlu0 %125, %v56
  %v127 = vpop.permute.xlu0 %126
  %130 = vset.pattern.permute.xlu0 0
  %131 = vperm.xlu0 %130, %v57
  %v132 = vpop.permute.xlu0 %131
  %135 = vset.pattern.permute.xlu0 0
  %136 = vperm.xlu0 %135, %v58
  %v137 = vpop.permute.xlu0 %136
  %vm139 = vcmask 64512
  %v141 = vsel %vm139, %v27, 0
  %v144 = vsel %vm139, %v28, 0
  %v147 = vsel %vm139, %v29, 0
  %v150 = vsel %vm139, %v30, 0
  %v153 = vsel %vm139, %v31, 0
  %v156 = vsel %vm139, %v32, 0
  %v159 = vsel %vm139, %v33, 0
  %v162 = vsel %vm139, %v34, 0
  %v165 = vsel %vm139, %v35, 0
  %v168 = vsel %vm139, %v36, 0
  %v171 = vsel %vm139, %v37, 0
  %v174 = vsel %vm139, %v38, 0
  %v177 = vsel %vm139, %v39, 0
  %v180 = vsel %vm139, %v40, 0
  %v183 = vsel %vm139, %v41, 0
  %v186 = vsel %vm139, %v42, 0
  %188 = vmatpush.msra.mxu0 0.0
  %189 = vmatpush.msra.mxu0 0.0
  %190 = vmatpush.msra.mxu0 0.0
  %191 = vmatpush.msra.mxu0 0.0
  %192 = vmatpush.msra.mxu0 0.0
  %193 = vmatpush.msra.mxu0 0.0
  %194 = vmatpush.msra.mxu0 0.0
  %195 = vmatpush.msra.mxu0 0.0
  %196 = vmatpush.msra.mxu0 0.0
  %197 = vmatpush.msra.mxu0 0.0
  %198 = vmatpush.msra.mxu0 0.0
  %199 = vmatpush.msra.mxu0 0.0
  %200 = vmatpush.msra.mxu0 0.0
  %201 = vmatpush.msra.mxu0 0.0
  %202 = vmatpush.msra.mxu0 0.0
  %203 = vmatpush.msra.mxu0 %v26
  %204 = vmatmul.f32.gmra.mxu0 %v141
  %v205 = vpop.f32.mrf.mxu0
  %v206 = vadd.f32 %v62, %v205
  %207 = vmatmul.f32.gmra.mxu0 %v144
  %v208 = vpop.f32.mrf.mxu0
  %v209 = vadd.f32 %v67, %v208
  %210 = vmatmul.f32.gmra.mxu0 %v147
  %v211 = vpop.f32.mrf.mxu0
  %v212 = vadd.f32 %v72, %v211
  %213 = vmatmul.f32.gmra.mxu0 %v150
  %v214 = vpop.f32.mrf.mxu0
  %v215 = vadd.f32 %v77, %v214
  %216 = vmatmul.f32.gmra.mxu0 %v153
  %v217 = vpop.f32.mrf.mxu0
  %v218 = vadd.f32 %v82, %v217
  %219 = vmatmul.f32.gmra.mxu0 %v156
  %v220 = vpop.f32.mrf.mxu0
  %v221 = vadd.f32 %v87, %v220
  %222 = vmatmul.f32.gmra.mxu0 %v159
  %v223 = vpop.f32.mrf.mxu0
  %v224 = vadd.f32 %v92, %v223
  %225 = vmatmul.f32.gmra.mxu0 %v162
  %v226 = vpop.f32.mrf.mxu0
  %v227 = vadd.f32 %v97, %v226
  %228 = vmatmul.f32.gmra.mxu0 %v165
  %v229 = vpop.f32.mrf.mxu0
  %v230 = vadd.f32 %v102, %v229
  %231 = vmatmul.f32.gmra.mxu0 %v168
  %v232 = vpop.f32.mrf.mxu0
  %v233 = vadd.f32 %v107, %v232
  %234 = vmatmul.f32.gmra.mxu0 %v171
  %v235 = vpop.f32.mrf.mxu0
  %v236 = vadd.f32 %v112, %v235
  %237 = vmatmul.f32.gmra.mxu0 %v174
  %v238 = vpop.f32.mrf.mxu0
  %v239 = vadd.f32 %v117, %v238
  %240 = vmatmul.f32.gmra.mxu0 %v177
  %v241 = vpop.f32.mrf.mxu0
  %v242 = vadd.f32 %v122, %v241
  %243 = vmatmul.f32.gmra.mxu0 %v180
  %v244 = vpop.f32.mrf.mxu0
  %v245 = vadd.f32 %v127, %v244
  %246 = vmatmul.f32.gmra.mxu0 %v183
  %v247 = vpop.f32.mrf.mxu0
  %v248 = vadd.f32 %v132, %v247
  %249 = vmatmul.f32.gmra.mxu0 %v186
  %v250 = vpop.f32.mrf.mxu0
  %v251 = vadd.f32 %v137, %v250
  %252 = vdwg.mxu0
  %v253 = vtanh.pop %v206
  %v254 = vtanh.pop %v209
  %v255 = vtanh.pop %v212
  %v256 = vtanh.pop %v215
  %v257 = vtanh.pop %v218
  %v258 = vtanh.pop %v221
  %v259 = vtanh.pop %v224
  %v260 = vtanh.pop %v227
  %v261 = vtanh.pop %v230
  %v262 = vtanh.pop %v233
  %v263 = vtanh.pop %v236
  %v264 = vtanh.pop %v239
  %v265 = vtanh.pop %v242
  %v266 = vtanh.pop %v245
  %v267 = vtanh.pop %v248
  %v268 = vtanh.pop %v251
  %v269 = vld [vmem:[%s3] sm:$0xff]
  %v270 = vld [vmem:[%s3 + $0x8] sm:$0xff]
  %v271 = vld [vmem:[%s3 + $0x10] sm:$0xff]
  %v272 = vld [vmem:[%s3 + $0x18] sm:$0xff]
  %v273 = vld [vmem:[%s3 + $0x20] sm:$0xff]
  %v274 = vld [vmem:[%s3 + $0x28] sm:$0xff]
  %v275 = vld [vmem:[%s3 + $0x30] sm:$0xff]
  %v276 = vld [vmem:[%s3 + $0x38] sm:$0xff]
  %v277 = vld [vmem:[%s3 + $0x40] sm:$0xff]
  %v278 = vld [vmem:[%s3 + $0x48] sm:$0xff]
  %v279 = vld [vmem:[%s3 + $0x50] sm:$0xff]
  %v280 = vld [vmem:[%s3 + $0x58] sm:$0xff]
  %v281 = vld [vmem:[%s3 + $0x60] sm:$0xff]
  %v282 = vld [vmem:[%s3 + $0x68] sm:$0xff]
  %v283 = vld [vmem:[%s3 + $0x70] sm:$0xff]
  %v284 = vld [vmem:[%s3 + $0x78] sm:$0xff]
  %v285 = vld [vmem:[%s4] sm:$0xff]
  %v286 = vld [vmem:[%s4 + $0x8] sm:$0xff]
  %v287 = vld [vmem:[%s4 + $0x10] sm:$0xff]
  %v288 = vld [vmem:[%s4 + $0x18] sm:$0xff]
  %v289 = vld [vmem:[%s4 + $0x20] sm:$0xff]
  %v290 = vld [vmem:[%s4 + $0x28] sm:$0xff]
  %v291 = vld [vmem:[%s4 + $0x30] sm:$0xff]
  %v292 = vld [vmem:[%s4 + $0x38] sm:$0xff]
  %v293 = vld [vmem:[%s4 + $0x40] sm:$0xff]
  %v294 = vld [vmem:[%s4 + $0x48] sm:$0xff]
  %v295 = vld [vmem:[%s4 + $0x50] sm:$0xff]
  %v296 = vld [vmem:[%s4 + $0x58] sm:$0xff]
  %v297 = vld [vmem:[%s4 + $0x60] sm:$0xff]
  %v298 = vld [vmem:[%s4 + $0x68] sm:$0xff]
  %v299 = vld [vmem:[%s4 + $0x70] sm:$0xff]
  %v300 = vld [vmem:[%s4 + $0x78] sm:$0xff]
  %302 = vset.pattern.permute.xlu0 0
  %303 = vperm.xlu0 %302, %v285
  %v304 = vpop.permute.xlu0 %303
  %307 = vset.pattern.permute.xlu0 0
  %308 = vperm.xlu0 %307, %v286
  %v309 = vpop.permute.xlu0 %308
  %312 = vset.pattern.permute.xlu0 0
  %313 = vperm.xlu0 %312, %v287
  %v314 = vpop.permute.xlu0 %313
  %317 = vset.pattern.permute.xlu0 0
  %318 = vperm.xlu0 %317, %v288
  %v319 = vpop.permute.xlu0 %318
  %322 = vset.pattern.permute.xlu0 0
  %323 = vperm.xlu0 %322, %v289
  %v324 = vpop.permute.xlu0 %323
  %327 = vset.pattern.permute.xlu0 0
  %328 = vperm.xlu0 %327, %v290
  %v329 = vpop.permute.xlu0 %328
  %332 = vset.pattern.permute.xlu0 0
  %333 = vperm.xlu0 %332, %v291
  %v334 = vpop.permute.xlu0 %333
  %337 = vset.pattern.permute.xlu0 0
  %338 = vperm.xlu0 %337, %v292
  %v339 = vpop.permute.xlu0 %338
  %342 = vset.pattern.permute.xlu0 0
  %343 = vperm.xlu0 %342, %v293
  %v344 = vpop.permute.xlu0 %343
  %347 = vset.pattern.permute.xlu0 0
  %348 = vperm.xlu0 %347, %v294
  %v349 = vpop.permute.xlu0 %348
  %352 = vset.pattern.permute.xlu0 0
  %353 = vperm.xlu0 %352, %v295
  %v354 = vpop.permute.xlu0 %353
  %357 = vset.pattern.permute.xlu0 0
  %358 = vperm.xlu0 %357, %v296
  %v359 = vpop.permute.xlu0 %358
  %362 = vset.pattern.permute.xlu0 0
  %363 = vperm.xlu0 %362, %v297
  %v364 = vpop.permute.xlu0 %363
  %367 = vset.pattern.permute.xlu0 0
  %368 = vperm.xlu0 %367, %v298
  %v369 = vpop.permute.xlu0 %368
  %372 = vset.pattern.permute.xlu0 0
  %373 = vperm.xlu0 %372, %v299
  %v374 = vpop.permute.xlu0 %373
  %377 = vset.pattern.permute.xlu0 0
  %378 = vperm.xlu0 %377, %v300
  %v379 = vpop.permute.xlu0 %378
  %381 = vmatpush.msra.mxu0 %v268
  %382 = vmatpush.msra.mxu0 %v267
  %383 = vmatpush.msra.mxu0 %v266
  %384 = vmatpush.msra.mxu0 %v265
  %385 = vmatpush.msra.mxu0 %v264
  %386 = vmatpush.msra.mxu0 %v263
  %387 = vmatpush.msra.mxu0 %v262
  %388 = vmatpush.msra.mxu0 %v261
  %389 = vmatpush.msra.mxu0 %v260
  %390 = vmatpush.msra.mxu0 %v259
  %391 = vmatpush.msra.mxu0 %v258
  %392 = vmatpush.msra.mxu0 %v257
  %393 = vmatpush.msra.mxu0 %v256
  %394 = vmatpush.msra.mxu0 %v255
  %395 = vmatpush.msra.mxu0 %v254
  %396 = vmatpush.msra.mxu0 %v253
  %397 = vmatmul.f32.gmra.mxu0 %v269
  %v398 = vpop.f32.mrf.mxu0
  %v399 = vadd.f32 %v304, %v398
  %400 = vmatmul.f32.gmra.mxu0 %v270
  %v401 = vpop.f32.mrf.mxu0
  %v402 = vadd.f32 %v309, %v401
  %403 = vmatmul.f32.gmra.mxu0 %v271
  %v404 = vpop.f32.mrf.mxu0
  %v405 = vadd.f32 %v314, %v404
  %406 = vmatmul.f32.gmra.mxu0 %v272
  %v407 = vpop.f32.mrf.mxu0
  %v408 = vadd.f32 %v319, %v407
  %409 = vmatmul.f32.gmra.mxu0 %v273
  %v410 = vpop.f32.mrf.mxu0
  %v411 = vadd.f32 %v324, %v410
  %412 = vmatmul.f32.gmra.mxu0 %v274
  %v413 = vpop.f32.mrf.mxu0
  %v414 = vadd.f32 %v329, %v413
  %415 = vmatmul.f32.gmra.mxu0 %v275
  %v416 = vpop.f32.mrf.mxu0
  %v417 = vadd.f32 %v334, %v416
  %418 = vmatmul.f32.gmra.mxu0 %v276
  %v419 = vpop.f32.mrf.mxu0
  %v420 = vadd.f32 %v339, %v419
  %421 = vmatmul.f32.gmra.mxu0 %v277
  %v422 = vpop.f32.mrf.mxu0
  %v423 = vadd.f32 %v344, %v422
  %424 = vmatmul.f32.gmra.mxu0 %v278
  %v425 = vpop.f32.mrf.mxu0
  %v426 = vadd.f32 %v349, %v425
  %427 = vmatmul.f32.gmra.mxu0 %v279
  %v428 = vpop.f32.mrf.mxu0
  %v429 = vadd.f32 %v354, %v428
  %430 = vmatmul.f32.gmra.mxu0 %v280
  %v431 = vpop.f32.mrf.mxu0
  %v432 = vadd.f32 %v359, %v431
  %433 = vmatmul.f32.gmra.mxu0 %v281
  %v434 = vpop.f32.mrf.mxu0
  %v435 = vadd.f32 %v364, %v434
  %436 = vmatmul.f32.gmra.mxu0 %v282
  %v437 = vpop.f32.mrf.mxu0
  %v438 = vadd.f32 %v369, %v437
  %439 = vmatmul.f32.gmra.mxu0 %v283
  %v440 = vpop.f32.mrf.mxu0
  %v441 = vadd.f32 %v374, %v440
  %442 = vmatmul.f32.gmra.mxu0 %v284
  %v443 = vpop.f32.mrf.mxu0
  %v444 = vadd.f32 %v379, %v443
  %445 = vdwg.mxu0
  %v446 = vtanh.pop %v399
  %v447 = vtanh.pop %v402
  %v448 = vtanh.pop %v405
  %v449 = vtanh.pop %v408
  %v450 = vtanh.pop %v411
  %v451 = vtanh.pop %v414
  %v452 = vtanh.pop %v417
  %v453 = vtanh.pop %v420
  %v454 = vtanh.pop %v423
  %v455 = vtanh.pop %v426
  %v456 = vtanh.pop %v429
  %v457 = vtanh.pop %v432
  %v458 = vtanh.pop %v435
  %v459 = vtanh.pop %v438
  %v460 = vtanh.pop %v441
  %v461 = vtanh.pop %v444
  %v462 = vld [vmem:[%s5] sm:$0xff]
  %v463 = vld [vmem:[%s6] sm:$0xff]
  %465 = vset.pattern.permute.xlu0 0
  %466 = vperm.xlu0 %465, %v463
  %v467 = vpop.permute.xlu0 %466
  %469 = vmatpush.msra.mxu0 %v461
  %470 = vmatpush.msra.mxu0 %v460
  %471 = vmatpush.msra.mxu0 %v459
  %472 = vmatpush.msra.mxu0 %v458
  %473 = vmatpush.msra.mxu0 %v457
  %474 = vmatpush.msra.mxu0 %v456
  %475 = vmatpush.msra.mxu0 %v455
  %476 = vmatpush.msra.mxu0 %v454
  %477 = vmatpush.msra.mxu0 %v453
  %478 = vmatpush.msra.mxu0 %v452
  %479 = vmatpush.msra.mxu0 %v451
  %480 = vmatpush.msra.mxu0 %v450
  %481 = vmatpush.msra.mxu0 %v449
  %482 = vmatpush.msra.mxu0 %v448
  %483 = vmatpush.msra.mxu0 %v447
  %484 = vmatpush.msra.mxu0 %v446
  %485 = vmatmul.f32.gmra.mxu0 %v462
  %v486 = vpop.f32.mrf.mxu0
  %v487 = vadd.f32 %v467, %v486
  %488 = vdwg.mxu0
  %489 = vst [vmem:[%s7] sm:$0xff] %v487
  // Predicated region
  $region30: #{latent_ode_forward.1} parent=0 // pred_check
    _
  $region31: #{latent_ode_forward.1} parent=0 // pred_check_branch
    %491 = sbr.rel (0) target = $region33
  $region32: #{latent_ode_forward.1} parent=0 // pred_region
    _
  $region33: #{latent_ode_forward.1} parent=0 // pred_fallthru
    _
  // Predicated region
  $region34: #{latent_ode_forward.1} parent=0 // pred_check
    _
  $region35: #{latent_ode_forward.1} parent=0 // pred_check_branch
    %493 = sbr.rel (0) target = $region37
  $region36: #{latent_ode_forward.1} parent=0 // pred_region
    _
  $region37: #{latent_ode_forward.1} parent=0 // pred_fallthru
    _

</llo_original>
